<compile_context>
chip_gen: v7x
topology: tpu7x:2x2x1
jax: 0.10.0
libtpu: 0.0.40
codegen_flags: <defaults>
</compile_context>

<pallas_src>
import math

import jax
import jax.numpy as jnp
from jax.experimental import pallas as pl
from jax.experimental.pallas import tpu as pltpu


# --------------------------------------------------------------------------- #
# Kernel
# --------------------------------------------------------------------------- #
def _make_kernel(tk, x_resident, single_k):
    """Build the tiled matmul + bias + ReLU kernel.

    x_ref: (tm, tk) or (tm, F_pad) if x_resident   [bf16]
    w_ref: (tk, tn)   pre-transposed (in, out)     [bf16]
    b_ref: (1, tn)                                 [f32]
    o_ref: (tm, tn)                                [f32]
    acc  : (tm, tn) f32 scratch (absent when single_k)
    """

    def kernel(x_ref, w_ref, b_ref, o_ref, *scratch):
        k = pl.program_id(2)

        if x_resident:
            start = pl.multiple_of(k * tk, tk)
            x_blk = x_ref[:, pl.ds(start, tk)]
        else:
            x_blk = x_ref[...]

        partial = jnp.dot(x_blk, w_ref[...], preferred_element_type=jnp.float32)

        if single_k:
            # Single reduction step: skip the scratch accumulator entirely.
            o_ref[...] = jnp.maximum(partial + b_ref[...], 0.0).astype(o_ref.dtype)
            return

        acc_ref, = scratch

        @pl.when(k == 0)
        def _init():
            acc_ref[...] = partial          # direct write, no zero-then-add

        @pl.when(k > 0)
        def _accumulate():
            acc_ref[...] += partial

        @pl.when(k == pl.num_programs(2) - 1)
        def _finalize():
            y = acc_ref[...] + b_ref[...]   # bias broadcast over rows (f32)
            o_ref[...] = jnp.maximum(y, 0.0).astype(o_ref.dtype)

    return kernel


# --------------------------------------------------------------------------- #
# Tiling helpers
# --------------------------------------------------------------------------- #
def _round_up(a, b):
    return -(-a // b) * b


def _vmem_capacity_bytes():
    """Physical VMEM of the attached chip; conservative (v7x) fallback."""
    try:
        info = pltpu.get_tpu_info()
        cap = getattr(info, "vmem_capacity_bytes", None)
        if cap:
            return int(cap)
    except Exception:
        pass
    return 64 * 1024 * 1024


def _pick_tm(M, sub):
    """Row tile: biggest of (512, 256, 128) that doesn't over-pad, else pad to
    the sublane pack for tiny M."""
    if M < 128:
        return _round_up(max(M, 1), sub)
    for c in (512, 256, 128):
        padded = _round_up(M, c)
        if padded - M <= max(M // 8, sub):      # tolerate <= ~12.5% row padding
            return c
    return 128


def _select_tiles(M, F_pad, in_itemsize, out_itemsize, budget):
    sub = 8 * (4 // in_itemsize)                # 8 sublanes f32, 16 bf16

    tm = _pick_tm(M, sub)
    tn = max(c for c in (512, 256, 128) if F_pad % c == 0)
    tk = max(c for c in (2048, 1024, 512, 256, 128) if F_pad % c == 0)

    def vmem_bytes(tm_, tn_, tk_, x_res):
        x_cols = F_pad if x_res else tk_
        return (2 * tm_ * x_cols * in_itemsize      # X, double-buffered
                + 2 * tk_ * tn_ * in_itemsize       # W, double-buffered
                + 2 * tn_ * 4                       # bias
                + 2 * tm_ * tn_ * out_itemsize      # output
                + tm_ * tn_ * 4)                    # f32 accumulator

    # Shrink until the double-buffered working set fits the budget
    # (tk first to preserve tm/tn -> re-streaming reduction).
    while vmem_bytes(tm, tn, tk, False) > budget:
        if tk > 512:
            tk //= 2
        elif tn > 128:
            tn //= 2
        elif tm > max(128, sub):
            tm = max(tm // 2, sub)
        elif tk > 128:
            tk //= 2
        else:
            break

    # Keep the whole X row-panel resident when it saves re-streaming and fits.
    x_resident = (F_pad // tn > 1 and F_pad // tk > 1
                  and vmem_bytes(tm, tn, tk, True) <= budget)
    return tm, tn, tk, x_resident


# --------------------------------------------------------------------------- #
# Forward wrapper
# --------------------------------------------------------------------------- #
def coupler_forward(x, weight, bias, N, N_i, compute_dtype=jnp.bfloat16):
    """x: (..., N, N_i). weight: (F, F) PyTorch (out, in) layout. bias: (F,).
    Returns relu(x_flat @ W.T + b) reshaped back to x.shape."""
    F = N * N_i
    assert x.shape[-2:] == (N, N_i)
    assert weight.shape == (F, F) and bias.shape == (F,)

    batch_shape = x.shape[:-2]
    M = math.prod(batch_shape) if batch_shape else 1
    if M == 0:                                   # empty batch: nothing to do
        return jnp.zeros(x.shape, x.dtype)

    out_dtype = x.dtype
    in_itemsize = jnp.dtype(compute_dtype).itemsize
    out_itemsize = jnp.dtype(out_dtype).itemsize

    # --- per-generation VMEM budgeting ------------------------------------- #
    cap = _vmem_capacity_bytes()
    tile_budget = min(cap // 2, 48 * 1024 * 1024)        # 32 MiB v7x, 48 MiB v5e/v6e
    vmem_limit = min(int(cap * 0.75), tile_budget + 16 * 1024 * 1024)

    # --- pad F to a lane-dense multiple of 128, pick tiles ------------------ #
    F_pad = _round_up(F, 128)
    tm, tn, tk, x_resident = _select_tiles(M, F_pad, in_itemsize, out_itemsize,
                                           tile_budget)
    M_pad = _round_up(M, tm)

    gi, gj, gk = M_pad // tm, F_pad // tn, F_pad // tk
    if gi == 1 and gj == 1:
        # Give v7x's second TensorCore at least one parallel block to chew on.
        M_pad = 2 * tm
        gi = 2

    single_k = (gk == 1)
    x_resident = x_resident and not single_k
    grid = (gi, gj, gk)

    # --- wrapper-side layout: flatten, pad, transpose, cast ----------------- #
    x2 = x.reshape(M, F)
    if (M_pad != M) or (F_pad != F):
        x2 = jnp.pad(x2, ((0, M_pad - M), (0, F_pad - F)))
    x2 = x2.astype(compute_dtype)

    w_t = jnp.transpose(weight)                  # (in, out): one-time transpose
    if F_pad != F:
        w_t = jnp.pad(w_t, ((0, F_pad - F), (0, F_pad - F)))
    w_t = w_t.astype(compute_dtype)

    b2 = bias.astype(jnp.float32)
    if F_pad != F:
        b2 = jnp.pad(b2, (0, F_pad - F))
    b2 = b2.reshape(1, F_pad)

    # --- BlockSpecs ---------------------------------------------------------- #
    if x_resident:
        x_spec = pl.BlockSpec((tm, F_pad), lambda i, j, k: (i, 0))
    else:
        x_spec = pl.BlockSpec((tm, tk), lambda i, j, k: (i, k))
    w_spec = pl.BlockSpec((tk, tn), lambda i, j, k: (k, j))
    b_spec = pl.BlockSpec((1, tn), lambda i, j, k: (0, j))
    o_spec = pl.BlockSpec((tm, tn), lambda i, j, k: (i, j))

    scratch = [] if single_k else [pltpu.VMEM((tm, tn), jnp.float32)]

    # --- cost estimate (actual streamed bytes) ------------------------------- #
    x_bytes = in_itemsize * M_pad * F_pad * (1 if x_resident else gj)
    w_bytes = in_itemsize * F_pad * F_pad * gi
    o_bytes = out_itemsize * M_pad * F_pad
    cost = pl.CostEstimate(
        flops=2 * M_pad * F_pad * F_pad,
        transcendentals=0,
        bytes_accessed=x_bytes + w_bytes + o_bytes + 4 * F_pad,
    )

    out2 = pl.pallas_call(
        _make_kernel(tk, x_resident, single_k),
        out_shape=jax.ShapeDtypeStruct((M_pad, F_pad), out_dtype),
        grid_spec=pltpu.PrefetchScalarGridSpec(
            num_scalar_prefetch=0,
            grid=grid,
            in_specs=[x_spec, w_spec, b_spec],
            out_specs=o_spec,
            scratch_shapes=scratch,
        ),
        compiler_params=pltpu.CompilerParams(
            dimension_semantics=("parallel", "parallel", "arbitrary"),
            vmem_limit_bytes=vmem_limit,
        ),
        cost_estimate=cost,
    )(x2, w_t, b2)

    out2 = out2[:M, :F]                          # drop padded rows / cols
    return out2.reshape(*batch_shape, N, N_i)


# --------------------------------------------------------------------------- #
# Parameter init mirroring Coupler.__init__ + _reset_parameters
# --------------------------------------------------------------------------- #
def init_coupler_params(key, N, N_i):
    F = N * N_i
    k = 1.0 / math.sqrt(F)
    keys = jax.random.split(key, 3)
    params = {}
    for name, kk in zip(("dense", "dense2", "dense3"), keys):
        params[name] = {
            "weight": jnp.zeros((F, F), jnp.float32),   # zeroed (dim > 1)
            "bias": jax.random.uniform(kk, (F,), jnp.float32, minval=-k, maxval=k),
        }
    return params
    # TODO(synk): dense2/dense3 are never used by forward() (as in PyTorch).


# --------------------------------------------------------------------------- #
# Self-test
# --------------------------------------------------------------------------- #
if __name__ == "__main__":
    # Small shapes consistent with the module: batch=2, N=8, N_i=16 -> F = 128.
    N, N_i = 8, 16
    batch = 2
    F = N * N_i

    key = jax.random.PRNGKey(0)
    k_x, k_p, k_w = jax.random.split(key, 3)
    x = jax.random.normal(k_x, (batch, N, N_i), jnp.float32)
    params = init_coupler_params(k_p, N, N_i)

    def jax_ref_bf16(x, w, b):
        bshape = x.shape[:-2]
        m = math.prod(bshape) if bshape else 1
        xb = x.reshape(m, F).astype(jnp.bfloat16)
        wb = w.T.astype(jnp.bfloat16)
        y = jnp.dot(xb, wb, preferred_element_type=jnp.float32) + b
        return jnp.maximum(y, 0.0).astype(x.dtype).reshape(*bshape, N, N_i)

    def jax_ref_f32(x, w, b):
        bshape = x.shape[:-2]
        m = math.prod(bshape) if bshape else 1
        y = x.reshape(m, F) @ w.T + b
        return jnp.maximum(y, 0.0).reshape(*bshape, N, N_i)

    # 1) Forward with the module's actual init (zero weight, random bias):
    #    output == relu(bias) broadcast, exact in f32.
    out = coupler_forward(x, params["dense"]["weight"], params["dense"]["bias"], N, N_i)
    out = jax.block_until_ready(out)
    ref = jax_ref_f32(x, params["dense"]["weight"], params["dense"]["bias"])
    assert out.shape == x.shape
    assert jnp.allclose(out, ref, atol=1e-5, rtol=1e-5)

    # 2) Exercise the matmul path with a non-zero weight (bf16 MXU inputs,
    #    f32 accumulation): compare tightly vs a bf16-aware reference and
    #    loosely vs the pure-f32 module semantics.
    w_rand = jax.random.normal(k_w, (F, F), jnp.float32) * 0.05
    out2 = coupler_forward(x, w_rand, params["dense"]["bias"], N, N_i)
    out2 = jax.block_until_ready(out2)
    ref2_bf16 = jax_ref_bf16(x, w_rand, params["dense"]["bias"])
    ref2_f32 = jax_ref_f32(x, w_rand, params["dense"]["bias"])
    assert jnp.allclose(out2, ref2_bf16, atol=1e-4, rtol=1e-4)
    assert jnp.allclose(out2, ref2_f32, atol=3e-2, rtol=3e-2)

    print("KERNEL_OK")
</pallas_src>

<mosaic_0001>
module attributes {stable_mosaic.version = 11 : i64} {
  func.func @kernel(%arg0: i32, %arg1: i32, %arg2: i32, %arg3: memref<16x128xbf16, #tpu.memory_space<vmem>>, %arg4: memref<128x128xbf16, #tpu.memory_space<vmem>>, %arg5: memref<1x128xf32, #tpu.memory_space<vmem>>, %arg6: memref<16x128xf32, #tpu.memory_space<vmem>>) attributes {dimension_semantics = [#tpu.dimension_semantics<parallel>, #tpu.dimension_semantics<parallel>, #tpu.dimension_semantics<arbitrary>], iteration_bounds = array<i64: 2, 1, 1>, scalar_prefetch = 0 : i64, scratch_operands = 0 : i64, tpu.core_type = #tpu.core_type<tc>, window_params = [{transform_indices = @transform_0, window_bounds = array<i64: 16, 128>}, {transform_indices = @transform_1, window_bounds = array<i64: 128, 128>}, {transform_indices = @transform_2, window_bounds = array<i64: 1, 128>}, {transform_indices = @transform_3, window_bounds = array<i64: 16, 128>}]} {
    %c0 = arith.constant 0 : index
    %c0_0 = arith.constant 0 : index
    %0 = vector.load %arg3[%c0, %c0_0] : memref<16x128xbf16, #tpu.memory_space<vmem>>, vector<16x128xbf16>
    %c0_1 = arith.constant 0 : index
    %c0_2 = arith.constant 0 : index
    %1 = vector.load %arg4[%c0_1, %c0_2] : memref<128x128xbf16, #tpu.memory_space<vmem>>, vector<128x128xbf16>
    %cst = arith.constant dense<0.000000e+00> : vector<16x128xf32>
    %2 = tpu.matmul %0, %1, %cst {dimension_numbers = #tpu.dot_dimension_numbers<[1], [0], [0], [1], [0, 0, 1, 1], [], []>} : vector<16x128xbf16>, vector<128x128xbf16>, vector<16x128xf32> -> vector<16x128xf32>
    %c0_3 = arith.constant 0 : index
    %c0_4 = arith.constant 0 : index
    %3 = vector.load %arg5[%c0_3, %c0_4] : memref<1x128xf32, #tpu.memory_space<vmem>>, vector<1x128xf32>
    %4 = vector.broadcast %3 : vector<1x128xf32> to vector<16x128xf32>
    %5 = arith.addf %2, %4 : vector<16x128xf32>
    %cst_5 = arith.constant 0.000000e+00 : f32
    %6 = vector.broadcast %cst_5 : f32 to vector<16x128xf32>
    %7 = arith.maximumf %5, %6 : vector<16x128xf32>
    %c0_6 = arith.constant 0 : index
    %c0_7 = arith.constant 0 : index
    %8 = vector.load %arg6[%c0_6, %c0_7] : memref<16x128xf32, #tpu.memory_space<vmem>>, vector<16x128xf32>
    tpu.vector_store %arg6[%c0_6, %c0_7], %7 {strides = array<i32>} : memref<16x128xf32, #tpu.memory_space<vmem>>, vector<16x128xf32>,
    return
  }
  func.func @transform_0(%arg0: i32, %arg1: i32, %arg2: i32) -> (i32, i32) {
    %c0_i32 = arith.constant 0 : i32
    return %arg0, %arg2 : i32, i32
  }
  func.func @transform_1(%arg0: i32, %arg1: i32, %arg2: i32) -> (i32, i32) {
    %c0_i32 = arith.constant 0 : i32
    return %arg2, %arg1 : i32, i32
  }
  func.func @transform_2(%arg0: i32, %arg1: i32, %arg2: i32) -> (i32, i32) {
    %c0_i32 = arith.constant 0 : i32
    %c0_i32_0 = arith.constant 0 : i32
    return %c0_i32, %arg1 : i32, i32
  }
  func.func @transform_3(%arg0: i32, %arg1: i32, %arg2: i32) -> (i32, i32) {
    %c0_i32 = arith.constant 0 : i32
    return %arg0, %arg1 : i32, i32
  }
}

</mosaic_0001>

<llo_original>
// kernel: tpu_custom_call.1
$region0: #{tpu_custom_call.1}
  #allocation0 [shape = 'u32[]', space=smem, size = 0x4, offset = 0x4, fixed_abs, tag = 'smem constant byte address 0x4 - core index']
  #allocation1 [shape = 'u32[144,128]{1,0:T(1,128)}', space=vmem, size = 0x12000, scoped, tag = 'internal scratch']
  %s0 = inlined_call_operand.hbm [shape: bf16[32,128], index: 0, kind: input, shape index: {}]
  %s1 = inlined_call_operand.hbm [shape: bf16[128,128], index: 1, kind: input, shape index: {}]
  %s2 = inlined_call_operand.vmem [shape: f32[1,128], index: 2, kind: input, shape index: {}]
  %s3 = inlined_call_operand.hbm [shape: f32[32,128], index: 3, kind: output, shape index: {}]
  %s4 = sld [smem:[#allocation0]]
  $region53: #{tpu_custom_call.1} parent=0
    _
  %s6 = ssub.s32 1, %s4
  %s7 = scalar_select 0, %s6, %s4
  $region1: #{tpu_custom_call.1} parent=0
    #allocation2 [shape = 'u8[8192]{0}', space=vmem, size = 0x2000, scoped, tag = 'input window, operand 0']
    #allocation3 [shape = 's32[2]{0}', space=sflag, size = 0x8, scoped, tag = 'scoped memory for tpu_custom_call.1']
    #allocation4 [shape = 's32[2]{0}', space=sflag, size = 0x8, scoped, tag = 'scoped memory for tpu_custom_call.1']
    #allocation5 [shape = 'u8[32768]{0}', space=vmem, size = 0x8000, scoped, tag = 'input window, operand 1, single buffered']
    #allocation6 [shape = 's32[1]{0}', space=sflag, size = 0x4, scoped, tag = 'scoped memory for tpu_custom_call.1']
    #allocation7 [shape = 'u8[16384]{0}', space=vmem, size = 0x4000, scoped, tag = 'output window, operand 0']
    %8 = vsyncpa [#allocation3], 0
    %s9 = scalar_lea.sflag [#allocation3], 1
    %10 = vsyncpa %s9, 0
    %11 = vsyncpa [#allocation6], 0
    %12 = vsyncpa [#allocation4], 0
    %s13 = scalar_lea.sflag [#allocation4], 1
    %14 = vsyncpa %s13, 0
    loop: start=0, step=1, limit=4
    $region2: #{tpu_custom_call.1} parent=1 // loop_pre_header
      _
    $region3: #{tpu_custom_call.1} parent=1 // loop_header
      %s16 = sphi 0, %s20
      %p17 = scmp.ge.s32.totalorder %s16, 4
      %s23 = sphi 0, %s42
      %s24 = sphi 0, %s38
      %s25 = sphi 0, %s34
      %s26 = sphi 0, %s23
      %s27 = sphi 0, %s24
      %s28 = sphi 0, %s25
      %s29 = sphi 0, %s26
      %s30 = sphi 0, %s27
      %s31 = sphi 0, %s28
      %s47 = sphi 0, %s49
      %s50 = sphi 0, %s47
      %s51 = sphi 0, %s50
      %s67 = sphi 0, %s51
      %s75 = sphi 0, %s77
      %s78 = sphi 0, %s75
      %s79 = sphi 0, %s78
      %s95 = sphi 0, %s79
      %s101 = sphi 0, %s103
      %s104 = sphi 0, %s101
      %s105 = sphi 0, %s104
      %s121 = sphi 0, %s105
      %s129 = sphi 0, %s131
      %s132 = sphi 0, %s129
      %s133 = sphi 0, %s132
      %s149 = sphi 0, %s133
    $region4: #{tpu_custom_call.1} parent=1 // loop_header_branch
      %19 = sbr.rel (%p17) target = $region8
    $region5: #{tpu_custom_call.1} parent=1 // loop_body
      %s21 = ssub.s32 %s16, 1
      %s22 = ssub.s32 %s16, 2
      %s32 = sadd.s32 1, %s25
      %p33 = scmp.ge.s32.totalorder %s32, 1
      %s34 = scalar_select %p33, 0, %s32
      %s35 = sadd.s32 1, %s24
      %s36 = scalar_select %p33, %s35, %s24
      %p37 = scmp.ge.s32.totalorder %s36, 1
      %s38 = scalar_select %p37, 0, %s36
      %s39 = sadd.s32 1, %s23
      %s40 = scalar_select %p37, %s39, %s23
      %p41 = scmp.ge.s32.totalorder %s40, 2
      %s42 = scalar_select %p41, 0, %s40
      %s43 = ssub.s32 %s23, %s42
      %s44 = ssub.s32 %s25, %s34
      %s45 = sor.u32 %s43, %s44
      %p46 = scmp.eq.s32.totalorder %s45, 0
      %s48 = sadd.s32 %s47, 1
      %s49 = scalar_select %p46, %s47, %s48
      %p52 = pneg %p46
      %p53 = scmp.eq.s32.totalorder %s16, 1
      %p54 = por %p52, %p53
      %p55 = scmp.ne.s32.totalorder %s47, %s50
      %p56 = scmp.eq.s32.totalorder %s16, 0
      %p57 = por %p55, %p56
      %p58 = scmp.ne.s32.totalorder %s47, %s50
      %p59 = scmp.eq.s32.totalorder %s21, 1
      %p60 = por %p58, %p59
      %p61 = scmp.ne.s32.totalorder %s50, %s51
      %p62 = scmp.eq.s32.totalorder %s21, 0
      %p63 = por %p61, %p62
      %p64 = scmp.ne.s32.totalorder %s50, %s51
      %p65 = scmp.eq.s32.totalorder %s22, 1
      %p66 = por %p64, %p65
      %p68 = scmp.ne.s32.totalorder %s51, %s67
      %p69 = scmp.eq.s32.totalorder %s22, 0
      %p70 = por %p68, %p69
      %s71 = ssub.s32 %s25, %s34
      %s72 = ssub.s32 %s24, %s38
      %s73 = sor.u32 %s71, %s72
      %p74 = scmp.eq.s32.totalorder %s73, 0
      %s76 = sadd.s32 %s75, 1
      %s77 = scalar_select %p74, %s75, %s76
      %p80 = pneg %p74
      %p81 = scmp.eq.s32.totalorder %s16, 1
      %p82 = por %p80, %p81
      %p83 = scmp.ne.s32.totalorder %s75, %s78
      %p84 = scmp.eq.s32.totalorder %s16, 0
      %p85 = por %p83, %p84
      %p86 = scmp.ne.s32.totalorder %s75, %s78
      %p87 = scmp.eq.s32.totalorder %s21, 1
      %p88 = por %p86, %p87
      %p89 = scmp.ne.s32.totalorder %s78, %s79
      %p90 = scmp.eq.s32.totalorder %s21, 0
      %p91 = por %p89, %p90
      %p92 = scmp.ne.s32.totalorder %s78, %s79
      %p93 = scmp.eq.s32.totalorder %s22, 1
      %p94 = por %p92, %p93
      %p96 = scmp.ne.s32.totalorder %s79, %s95
      %p97 = scmp.eq.s32.totalorder %s22, 0
      %p98 = por %p96, %p97
      %s99 = ssub.s32 %s24, %s38
      %p100 = scmp.eq.s32.totalorder %s99, 0
      %s102 = sadd.s32 %s101, 1
      %s103 = scalar_select %p100, %s101, %s102
      %p106 = pneg %p100
      %p107 = scmp.eq.s32.totalorder %s16, 1
      %p108 = por %p106, %p107
      %p109 = scmp.ne.s32.totalorder %s101, %s104
      %p110 = scmp.eq.s32.totalorder %s16, 0
      %p111 = por %p109, %p110
      %p112 = scmp.ne.s32.totalorder %s101, %s104
      %p113 = scmp.eq.s32.totalorder %s21, 1
      %p114 = por %p112, %p113
      %p115 = scmp.ne.s32.totalorder %s104, %s105
      %p116 = scmp.eq.s32.totalorder %s21, 0
      %p117 = por %p115, %p116
      %p118 = scmp.ne.s32.totalorder %s104, %s105
      %p119 = scmp.eq.s32.totalorder %s22, 1
      %p120 = por %p118, %p119
      %p122 = scmp.ne.s32.totalorder %s105, %s121
      %p123 = scmp.eq.s32.totalorder %s22, 0
      %p124 = por %p122, %p123
      %s125 = ssub.s32 %s23, %s42
      %s126 = ssub.s32 %s24, %s38
      %s127 = sor.u32 %s125, %s126
      %p128 = scmp.eq.s32.totalorder %s127, 0
      %s130 = sadd.s32 %s129, 1
      %s131 = scalar_select %p128, %s129, %s130
      %p134 = pneg %p128
      %p135 = scmp.eq.s32.totalorder %s16, 1
      %p136 = por %p134, %p135
      %p137 = scmp.ne.s32.totalorder %s129, %s132
      %p138 = scmp.eq.s32.totalorder %s16, 0
      %p139 = por %p137, %p138
      %p140 = scmp.ne.s32.totalorder %s129, %s132
      %p141 = scmp.eq.s32.totalorder %s21, 1
      %p142 = por %p140, %p141
      %p143 = scmp.ne.s32.totalorder %s132, %s133
      %p144 = scmp.eq.s32.totalorder %s21, 0
      %p145 = por %p143, %p144
      %p146 = scmp.ne.s32.totalorder %s132, %s133
      %p147 = scmp.eq.s32.totalorder %s22, 1
      %p148 = por %p146, %p147
      %p150 = scmp.ne.s32.totalorder %s133, %s149
      %p151 = scmp.eq.s32.totalorder %s22, 0
      %p152 = por %p150, %p151
      %p153 = scmp.le.s32.totalorder 1, %s16
      %p154 = scmp.lt.s32.totalorder %s16, 3
      %p155 = pnand %p153, %p154
      %p156 = pneg %p155
      // Predicated region
      $region9: #{tpu_custom_call.1} parent=5 // pred_check
        _
      $region10: #{tpu_custom_call.1} parent=5 // pred_check_branch
        %158 = sbr.rel (%p155) target = $region12
      $region11: #{tpu_custom_call.1} parent=5 // pred_region
        %s159 = ssub.s32 %s16, 1
        // Predicated region
        $region13: #{tpu_custom_call.1} parent=11 // pred_check
          %p160 = pneg %p91
        $region14: #{tpu_custom_call.1} parent=11 // pred_check_branch
          %162 = sbr.rel (%p160) target = $region16
        $region15: #{tpu_custom_call.1} parent=11 // pred_region
          %s163 = smul.u32 16, %s28
          %s165 = ssub.s32 1024, 1024
          %166 = vsyncadd [#allocation6], %s165
          %s167 = sadd.s32 %s27, %s163
          %s168 = smul.addr %s167, 64
          %s169 = scalar_lea.hbm %s1, %s168
          %s170 = sshll.u32 [#allocation5], 4
          %s171 = int_to_ptr.vmem [resolvable:$true] %s170
          %176 = dma.hbm_to_vmem [thread:$0]  %s169, 1024, %s171, [#allocation6], 64, 64, 4
        $region16: #{tpu_custom_call.1} parent=11 // pred_fallthru
          _
        // Predicated region
        $region17: #{tpu_custom_call.1} parent=11 // pred_check
          %p177 = pneg %p117
        $region18: #{tpu_custom_call.1} parent=11 // pred_check_branch
          %179 = sbr.rel (%p177) target = $region20
        $region19: #{tpu_custom_call.1} parent=11 // pred_region
          %p180 = scmp.lt.s32.totalorder %s27, 0
          %s181 = scalar_select %p180, %s27, 0
          %s182 = scalar_lea.vmem %s2, %s181
        $region20: #{tpu_custom_call.1} parent=11 // pred_fallthru
          _
      $region12: #{tpu_custom_call.1} parent=5 // pred_fallthru
        _
      %p183 = scmp.lt.s32.totalorder %s16, 2
      // Predicated region
      $region21: #{tpu_custom_call.1} parent=5 // pred_check
        %p184 = pneg %p183
      $region22: #{tpu_custom_call.1} parent=5 // pred_check_branch
        %186 = sbr.rel (%p184) target = $region24
      $region23: #{tpu_custom_call.1} parent=5 // pred_region
        // Predicated region
        $region25: #{tpu_custom_call.1} parent=23 // pred_check
          %p187 = pneg %p57
        $region26: #{tpu_custom_call.1} parent=23 // pred_check_branch
          %189 = sbr.rel (%p187) target = $region28
        $region27: #{tpu_custom_call.1} parent=23 // pred_region
          %s190 = sand.u32 %s47, 1
          %s191 = scalar_lea.sflag [#allocation3], %s190
          %s192 = sand.u32 %s47, 1
          %s193 = smul.addr %s192, 8
          %s194 = scalar_lea.vmem [#allocation2], %s193
          %s195 = smul.u32 2, %s23
          %s197 = ssub.s32 128, 128
          %198 = vsyncadd %s191, %s197
          %s199 = sadd.s32 %s25, %s195
          %s200 = smul.addr %s199, 64
          %s201 = scalar_lea.hbm %s0, %s200
          %s202 = sshll.u32 %s194, 4
          %s203 = int_to_ptr.vmem [resolvable:$true] %s202
          %208 = dma.hbm_to_vmem [thread:$0]  %s201, 128, %s203, %s191, 64, 64, 4
        $region28: #{tpu_custom_call.1} parent=23 // pred_fallthru
          _
      $region24: #{tpu_custom_call.1} parent=5 // pred_fallthru
        _
      %p209 = scmp.le.s32.totalorder 1, %s16
      %p210 = scmp.lt.s32.totalorder %s16, 3
      %p211 = pnand %p209, %p210
      %p212 = pneg %p211
      // Predicated region
      $region29: #{tpu_custom_call.1} parent=5 // pred_check
        _
      $region30: #{tpu_custom_call.1} parent=5 // pred_check_branch
        %214 = sbr.rel (%p211) target = $region32
      $region31: #{tpu_custom_call.1} parent=5 // pred_region
        %s215 = ssub.s32 %s16, 1
        %s216 = sand.u32 %s50, 1
        %s217 = scalar_lea.sflag [#allocation3], %s216
        %s218 = sand.u32 %s50, 1
        %s219 = smul.addr %s218, 8
        %s220 = scalar_lea.vmem [#allocation2], %s219
        // Predicated region
        $region33: #{tpu_custom_call.1} parent=31 // pred_check
          %p221 = pneg %p63
        $region34: #{tpu_custom_call.1} parent=31 // pred_check_branch
          %223 = sbr.rel (%p221) target = $region36
        $region35: #{tpu_custom_call.1} parent=31 // pred_region
          %224 = dma.done %s217, 128
        $region36: #{tpu_custom_call.1} parent=31 // pred_fallthru
          _
        // Predicated region
        $region37: #{tpu_custom_call.1} parent=31 // pred_check
          %p225 = pneg %p91
        $region38: #{tpu_custom_call.1} parent=31 // pred_check_branch
          %227 = sbr.rel (%p225) target = $region40
        $region39: #{tpu_custom_call.1} parent=31 // pred_region
          %228 = dma.done [#allocation6], 1024
        $region40: #{tpu_custom_call.1} parent=31 // pred_fallthru
          _
        %s229 = sand.u32 %s50, 1
        %s230 = scalar_lea.sflag [#allocation3], %s229
        %s231 = sand.u32 %s50, 1
        %s232 = smul.addr %s231, 8
        %s233 = scalar_lea.vmem [#allocation2], %s232
        %p234 = pneg %p63
        %p235 = pneg %p60
        %p236 = pneg %p91
        %p237 = pneg %p88
        %p238 = scmp.lt.s32.totalorder %s27, 0
        %s239 = scalar_select %p238, %s27, 0
        %s240 = scalar_lea.vmem %s2, %s239
        %p241 = pneg %p117
        %p242 = pneg %p114
        %p243 = pneg %p145
        %p244 = pneg %p142
        %s245 = sand.u32 %s132, 1
        %s246 = scalar_lea.sflag [#allocation4], %s245
        %s247 = sand.u32 %s132, 1
        %s248 = smul.addr %s247, 16
        %s249 = scalar_lea.vmem [#allocation7], %s248
        %s250 = smul.u32 2, %s26
        %s251 = smul.u32 16, %s28
        %p252 = scmp.lt.s32.totalorder %s27, 0
        %s253 = scalar_select %p252, %s27, 0
        %s254 = scalar_lea.vmem %s2, %s253
        %s255 = smul.u32 2, %s26
        %v257 = vld [vmem:[%s220] sm:$0xf]
        %v258 = vld [vmem:[%s220 + $0x4] sm:$0xf]
        %v259 = vld [vmem:[#allocation5] sm:$0xf]
        %v260 = vld [vmem:[#allocation5 + $0x4] sm:$0xf]
        %v261 = vld [vmem:[#allocation5 + $0x8] sm:$0xf]
        %v262 = vld [vmem:[#allocation5 + $0xc] sm:$0xf]
        %v263 = vld [vmem:[#allocation5 + $0x10] sm:$0xf]
        %v264 = vld [vmem:[#allocation5 + $0x14] sm:$0xf]
        %v265 = vld [vmem:[#allocation5 + $0x18] sm:$0xf]
        %v266 = vld [vmem:[#allocation5 + $0x1c] sm:$0xf]
        %v267 = vld [vmem:[#allocation5 + $0x20] sm:$0xf]
        %v268 = vld [vmem:[#allocation5 + $0x24] sm:$0xf]
        %v269 = vld [vmem:[#allocation5 + $0x28] sm:$0xf]
        %v270 = vld [vmem:[#allocation5 + $0x2c] sm:$0xf]
        %v271 = vld [vmem:[#allocation5 + $0x30] sm:$0xf]
        %v272 = vld [vmem:[#allocation5 + $0x34] sm:$0xf]
        %v273 = vld [vmem:[#allocation5 + $0x38] sm:$0xf]
        %v274 = vld [vmem:[#allocation5 + $0x3c] sm:$0xf]
        %v275 = vld [vmem:[%s254] sm:$0x1]
        %v277 = vlaneseq
        %v278 = vshrl.u32 %v277, 7
        %v279 = vsub.s32 0, %v278
        %v280 = vrot.slane %v275, %v279
        %v284 = vunpack.c.l.b16 %v257
        %v285 = vunpack.c.l.b16 %v258
        %v286 = vpack.c.b16 %v285, %v284
        %v304 = vunpack.c.l.b16 %v259
        %v305 = vunpack.c.l.b16 %v260
        %v306 = vunpack.c.l.b16 %v261
        %v307 = vunpack.c.l.b16 %v262
        %v308 = vunpack.c.l.b16 %v263
        %v309 = vunpack.c.l.b16 %v264
        %v310 = vunpack.c.l.b16 %v265
        %v311 = vunpack.c.l.b16 %v266
        %v312 = vunpack.c.l.b16 %v267
        %v313 = vunpack.c.l.b16 %v268
        %v314 = vunpack.c.l.b16 %v269
        %v315 = vunpack.c.l.b16 %v270
        %v316 = vunpack.c.l.b16 %v271
        %v317 = vunpack.c.l.b16 %v272
        %v318 = vunpack.c.l.b16 %v273
        %v319 = vunpack.c.l.b16 %v274
        %v320 = vpack.c.b16 %v305, %v304
        %v321 = vpack.c.b16 %v307, %v306
        %v322 = vpack.c.b16 %v309, %v308
        %v323 = vpack.c.b16 %v311, %v310
        %v324 = vpack.c.b16 %v313, %v312
        %v325 = vpack.c.b16 %v315, %v314
        %v326 = vpack.c.b16 %v317, %v316
        %v327 = vpack.c.b16 %v319, %v318
        %336 = vmatprep.subr.bf16.mxu0 0
        %337 = vmatpush1.bf16.msra.mxu0 %v320
        %338 = vmatprep.subr.bf16.mxu0 0
        %339 = vmatpush1.bf16.msra.mxu0 %v321
        %340 = vmatprep.subr.bf16.mxu0 0
        %341 = vmatpush1.bf16.msra.mxu0 %v322
        %342 = vmatprep.subr.bf16.mxu0 0
        %343 = vmatpush1.bf16.msra.mxu0 %v323
        %344 = vmatprep.subr.bf16.mxu0 0
        %345 = vmatpush1.bf16.msra.mxu0 %v324
        %346 = vmatprep.subr.bf16.mxu0 0
        %347 = vmatpush1.bf16.msra.mxu0 %v325
        %348 = vmatprep.subr.bf16.mxu0 0
        %349 = vmatpush1.bf16.msra.mxu0 %v326
        %350 = vmatprep.subr.bf16.mxu0 0
        %351 = vmatpush1.bf16.msra.mxu0 %v327
        %352 = vmatprep.subr.bf16.mxu0 0
        %353 = vmatpush1.bf16.msra.mxu0 0
        %354 = vmatprep.subr.bf16.mxu0 0
        %355 = vmatpush1.bf16.msra.mxu0 0
        %356 = vmatprep.subr.bf16.mxu0 0
        %357 = vmatpush1.bf16.msra.mxu0 0
        %358 = vmatprep.subr.bf16.mxu0 0
        %359 = vmatpush1.bf16.msra.mxu0 0
        %360 = vmatprep.subr.bf16.mxu0 0
        %361 = vmatpush1.bf16.msra.mxu0 0
        %362 = vmatprep.subr.bf16.mxu0 0
        %363 = vmatpush1.bf16.msra.mxu0 0
        %364 = vmatprep.subr.bf16.mxu0 0
        %365 = vmatpush1.bf16.msra.mxu0 0
        %366 = vmatprep.subr.bf16.mxu0 0
        %367 = vmatpush1.bf16.msra.mxu0 0
        %368 = vmatprep.mubr.bf16.mxu0 0
        %369 = vmatmul.mubr.bf16.gmra.mrb[0].mxu0 %v286
        %v370 = vpop.f32.mrb[0].mxu0
        %v371 = vadd.f32 %v280, %v370
        %v372 = vpop.f32.mrb[0].mxu0
        %v373 = vpop.f32.mrb[0].mxu0
        %v374 = vadd.f32 %v280, %v373
        %v375 = vpop.f32.mrb[0].mxu0
        %376 = vdwg.mxu0
        %v377 = vmax.f32 %v371, 0.0
        %v378 = vmax.f32 %v374, 0.0
        %379 = vst [vmem:[%s249] sm:$0xff] %v377
        %380 = vst [vmem:[%s249 + $0x8] sm:$0xff] %v378
        %s381 = sand.u32 %s132, 1
        %s382 = scalar_lea.sflag [#allocation4], %s381
        %s383 = sand.u32 %s132, 1
        %s384 = smul.addr %s383, 16
        %s385 = scalar_lea.vmem [#allocation7], %s384
        // Predicated region
        $region41: #{tpu_custom_call.1} parent=31 // pred_check
          %p386 = pneg %p142
        $region42: #{tpu_custom_call.1} parent=31 // pred_check_branch
          %388 = sbr.rel (%p386) target = $region44
        $region43: #{tpu_custom_call.1} parent=31 // pred_region
          %s389 = smul.u32 2, %s26
          %s391 = ssub.s32 256, 256
          %392 = vsyncadd %s382, %s391
          %s393 = sadd.s32 %s27, %s389
          %s394 = smul.addr %s393, 128
          %s395 = scalar_lea.hbm %s3, %s394
          %s396 = sshll.u32 %s385, 4
          %s397 = int_to_ptr.vmem [resolvable:$true] %s396
          %402 = dma.vmem_to_hbm [thread:$0]  %s397, 256, %s395, %s382, 128, 128, 8
        $region44: #{tpu_custom_call.1} parent=31 // pred_fallthru
          _
      $region32: #{tpu_custom_call.1} parent=5 // pred_fallthru
        _
      %p403 = scmp.le.s32.totalorder 2, %s16
      // Predicated region
      $region45: #{tpu_custom_call.1} parent=5 // pred_check
        %p404 = pneg %p403
      $region46: #{tpu_custom_call.1} parent=5 // pred_check_branch
        %406 = sbr.rel (%p404) target = $region48
      $region47: #{tpu_custom_call.1} parent=5 // pred_region
        %s407 = ssub.s32 %s16, 2
        // Predicated region
        $region49: #{tpu_custom_call.1} parent=47 // pred_check
          %p408 = pneg %p148
        $region50: #{tpu_custom_call.1} parent=47 // pred_check_branch
          %410 = sbr.rel (%p408) target = $region52
        $region51: #{tpu_custom_call.1} parent=47 // pred_region
          %s411 = sand.u32 %s133, 1
          %s412 = scalar_lea.sflag [#allocation4], %s411
          %s413 = sand.u32 %s133, 1
          %s414 = smul.addr %s413, 16
          %s415 = scalar_lea.vmem [#allocation7], %s414
          %416 = dma.done %s412, 256
        $region52: #{tpu_custom_call.1} parent=47 // pred_fallthru
          _
      $region48: #{tpu_custom_call.1} parent=5 // pred_fallthru
        _
    $region6: #{tpu_custom_call.1} parent=1 // loop_footer
      %s20 = sadd.s32 1, %s16
    $region7: #{tpu_custom_call.1} parent=1 // loop_footer_branch
      %15 = sbr.rel target = $region3
    $region8: #{tpu_custom_call.1} parent=1 // loop_exit
      _
    %417 = vsyncpa [#allocation3], 1
    %s418 = scalar_lea.sflag [#allocation3], 1
    %419 = vsyncpa %s418, 1
    %420 = vsyncpa [#allocation6], 1
    %421 = vsyncpa [#allocation4], 1
    %s422 = scalar_lea.sflag [#allocation4], 1
    %423 = vsyncpa %s422, 1

</llo_original>
